<compile_context>
chip_gen: v7x
topology: tpu7x:2x2x1
jax: 0.10.0
libtpu: 0.0.40
codegen_flags: <defaults>
</compile_context>

<pallas_src>
import jax
import jax.numpy as jnp
from jax.experimental import pallas as pl
from jax.experimental.pallas import tpu as pltpu


def _round_up(x: int, m: int) -> int:
    return (x + m - 1) // m * m


def _low_rank_linear_kernel(x_ref, w1t_ref, w0t_ref, b_ref, o_ref):
    # x_ref  : (tm, in_f)      batch tile (streamed over the grid)
    # w1t_ref: (in_f, rank_p)  w1.T, rank zero-padded to 128 multiple (resident)
    # w0t_ref: (rank_p, out_p) w0.T, rank/out zero-padded (resident)
    # b_ref  : (1, out_p)      bias (f32, zero-padded)
    # o_ref  : (tm, out_p)     lane-dense output tile
    # h = x @ w1.T -> (tm, rank_p); MXU-native contraction (LHS last vs RHS first).
    h = jnp.dot(x_ref[...], w1t_ref[...], preferred_element_type=jnp.float32)
    # y = h @ w0.T -> (tm, out_p); cast h back to the weight dtype so bf16 weights
    # hit the bf16 MXU fast path (no-op for f32).
    y = jnp.dot(h.astype(w0t_ref.dtype), w0t_ref[...],
                preferred_element_type=jnp.float32)
    o_ref[...] = (y + b_ref[...].astype(jnp.float32)).astype(o_ref.dtype)


def low_rank_linear(x, w1, w0, bias=None, s=None, *, tm=256,
                    compute_dtype=None, out_dtype=None):
    """y = (x @ w1.T) @ w0.T + bias, computed in a Pallas TPU kernel.

    x: (B, in_f), w1: (rank, in_f), w0: (out_f, rank), bias: (out_f,) or None.
    s: optional (rank, rank) diag(S) for the keep_singular_values_separated path.
    tm: batch tile (sweep 128/256/512; clamped/padded for small batches).
    compute_dtype: e.g. jnp.bfloat16 to halve HBM traffic (f32 accumulation kept).
    """
    B, in_f = x.shape
    rank, in_f2 = w1.shape
    out_f, rank2 = w0.shape
    assert in_f == in_f2 and rank == rank2, "shape mismatch"

    if out_dtype is None:
        out_dtype = x.dtype

    if s is not None:  # keep_singular_values_separated: fold S into w0.
        w0 = w0 @ s

    if compute_dtype is not None:
        x = x.astype(compute_dtype)
        w1 = w1.astype(compute_dtype)
        w0 = w0.astype(compute_dtype)

    # MXU-native layouts: contract LHS-last against RHS-first (one-time wrapper
    # transpose is free layout plumbing).
    w1t = w1.T  # (in_f, rank)
    w0t = w0.T  # (rank, out_f)

    # Zero-pad rank and out_features to multiples of 128 (exact: padded rank rows
    # of w0t are zero, padded output lanes are sliced off below).
    rank_p = _round_up(rank, 128)
    out_p = _round_up(out_f, 128)
    if rank_p != rank:
        w1t = jnp.pad(w1t, ((0, 0), (0, rank_p - rank)))
        w0t = jnp.pad(w0t, ((0, rank_p - rank), (0, 0)))
    if out_p != out_f:
        w0t = jnp.pad(w0t, ((0, 0), (0, out_p - out_f)))

    if bias is None:
        bias2d = jnp.zeros((1, out_p), dtype=jnp.float32)
    else:
        bias2d = jnp.pad(bias.astype(jnp.float32).reshape(1, out_f),
                         ((0, 0), (0, out_p - out_f)))

    # Large, lane-dense batch tiles; pad ragged / small batches.
    tm_eff = min(int(tm), _round_up(B, 8))
    B_p = _round_up(B, tm_eff)
    if B_p != B:
        x = jnp.pad(x, ((0, B_p - B), (0, 0)))

    # VMEM budget: double-buffered x/out tiles + (conservatively double-buffered)
    # constant-index weights/bias, plus slack; clamp within v7x's 64 MiB physical.
    itemsize = jnp.dtype(x.dtype).itemsize
    vmem_bytes = 2 * tm_eff * in_f * itemsize                    # x tiles
    vmem_bytes += 2 * tm_eff * out_p * jnp.dtype(out_dtype).itemsize  # out tiles
    vmem_bytes += 2 * (in_f * rank_p + rank_p * out_p) * itemsize     # weights
    vmem_bytes += 2 * out_p * 4                                       # bias
    vmem_limit = max(int(vmem_bytes) + (4 << 20), 16 << 20)
    vmem_limit = min(vmem_limit, 64 << 20)

    grid = (B_p // tm_eff,)
    out_padded = pl.pallas_call(
        _low_rank_linear_kernel,
        out_shape=jax.ShapeDtypeStruct((B_p, out_p), out_dtype),
        grid_spec=pltpu.PrefetchScalarGridSpec(
            num_scalar_prefetch=0,
            grid=grid,
            in_specs=[
                pl.BlockSpec((tm_eff, in_f), lambda i: (i, 0)),    # x: streamed over batch
                pl.BlockSpec((in_f, rank_p), lambda i: (0, 0)),    # w1.T (constant index -> fetched once)
                pl.BlockSpec((rank_p, out_p), lambda i: (0, 0)),   # w0.T (constant index -> fetched once)
                pl.BlockSpec((1, out_p), lambda i: (0, 0)),        # bias
            ],
            out_specs=pl.BlockSpec((tm_eff, out_p), lambda i: (i, 0)),
        ),
        compiler_params=pltpu.CompilerParams(
            dimension_semantics=("parallel",),   # batch axis splittable across v7x's 2 TCs
            vmem_limit_bytes=vmem_limit,
        ),
    )(x, w1t, w0t, bias2d)

    # Strip batch / out_features padding.
    return out_padded[:B, :out_f]


if __name__ == "__main__":
    # Small, deterministic setup (functional / from_linear parameter convention).
    in_features = 32
    out_features = 48
    rank = 8
    batch = 16

    key = jax.random.PRNGKey(0)
    kx, kw0, kw1, kb = jax.random.split(key, 4)

    x = jax.random.normal(kx, (batch, in_features), dtype=jnp.float32)
    w0 = jax.random.normal(kw0, (out_features, rank), dtype=jnp.float32)   # U[:, :r] @ diag(S)
    w1 = jax.random.normal(kw1, (rank, in_features), dtype=jnp.float32)    # V_T[:r, :]
    bias = jax.random.normal(kb, (out_features,), dtype=jnp.float32)

    # Pure-JAX reference of the PyTorch forward.
    y_ref = (x @ w1.T) @ w0.T + bias

    # f32 path.
    y = jax.block_until_ready(low_rank_linear(x, w1, w0, bias))
    assert y.shape == (batch, out_features)
    assert jnp.allclose(y, y_ref, atol=1e-4, rtol=1e-4), "f32 mismatch vs reference"

    # bf16 compute path (f32 MXU accumulation), looser tolerance.
    y_bf16 = jax.block_until_ready(
        low_rank_linear(x, w1, w0, bias,
                        compute_dtype=jnp.bfloat16, out_dtype=jnp.float32))
    assert y_bf16.shape == (batch, out_features)
    assert jnp.allclose(y_bf16, y_ref, atol=0.5, rtol=5e-2), "bf16 mismatch vs reference"

    print("KERNEL_OK")
</pallas_src>

<mosaic_0001>
module attributes {stable_mosaic.version = 11 : i64} {
  func.func @_low_rank_linear_kernel(%arg0: i32, %arg1: memref<16x32xf32, #tpu.memory_space<vmem>>, %arg2: memref<32x128xf32, #tpu.memory_space<vmem>>, %arg3: memref<128x128xf32, #tpu.memory_space<vmem>>, %arg4: memref<1x128xf32, #tpu.memory_space<vmem>>, %arg5: memref<16x128xf32, #tpu.memory_space<vmem>>) attributes {dimension_semantics = [#tpu.dimension_semantics<parallel>], iteration_bounds = array<i64: 1>, scalar_prefetch = 0 : i64, scratch_operands = 0 : i64, tpu.core_type = #tpu.core_type<tc>, window_params = [{transform_indices = @transform_0, window_bounds = array<i64: 16, 32>}, {pipeline_mode = #tpu.pipeline_mode<synchronous>, transform_indices = @transform_1, window_bounds = array<i64: 32, 128>}, {pipeline_mode = #tpu.pipeline_mode<synchronous>, transform_indices = @transform_2, window_bounds = array<i64: 128, 128>}, {pipeline_mode = #tpu.pipeline_mode<synchronous>, transform_indices = @transform_3, window_bounds = array<i64: 1, 128>}, {transform_indices = @transform_4, window_bounds = array<i64: 16, 128>}]} {
    %c0 = arith.constant 0 : index
    %c0_0 = arith.constant 0 : index
    %0 = vector.load %arg1[%c0, %c0_0] : memref<16x32xf32, #tpu.memory_space<vmem>>, vector<16x32xf32>
    %c0_1 = arith.constant 0 : index
    %c0_2 = arith.constant 0 : index
    %1 = vector.load %arg2[%c0_1, %c0_2] : memref<32x128xf32, #tpu.memory_space<vmem>>, vector<32x128xf32>
    %cst = arith.constant dense<0.000000e+00> : vector<16x128xf32>
    %2 = tpu.matmul %0, %1, %cst {dimension_numbers = #tpu.dot_dimension_numbers<[1], [0], [0], [1], [0, 0, 1, 1], [], []>} : vector<16x32xf32>, vector<32x128xf32>, vector<16x128xf32> -> vector<16x128xf32>
    %c0_3 = arith.constant 0 : index
    %c0_4 = arith.constant 0 : index
    %3 = vector.load %arg3[%c0_3, %c0_4] : memref<128x128xf32, #tpu.memory_space<vmem>>, vector<128x128xf32>
    %cst_5 = arith.constant dense<0.000000e+00> : vector<16x128xf32>
    %4 = tpu.matmul %2, %3, %cst_5 {dimension_numbers = #tpu.dot_dimension_numbers<[1], [0], [0], [1], [0, 0, 1, 1], [], []>} : vector<16x128xf32>, vector<128x128xf32>, vector<16x128xf32> -> vector<16x128xf32>
    %c0_6 = arith.constant 0 : index
    %c0_7 = arith.constant 0 : index
    %5 = vector.load %arg4[%c0_6, %c0_7] : memref<1x128xf32, #tpu.memory_space<vmem>>, vector<1x128xf32>
    %6 = vector.broadcast %5 : vector<1x128xf32> to vector<16x128xf32>
    %7 = arith.addf %4, %6 : vector<16x128xf32>
    %c0_8 = arith.constant 0 : index
    %c0_9 = arith.constant 0 : index
    %8 = vector.load %arg5[%c0_8, %c0_9] : memref<16x128xf32, #tpu.memory_space<vmem>>, vector<16x128xf32>
    tpu.vector_store %arg5[%c0_8, %c0_9], %7 {strides = array<i32>} : memref<16x128xf32, #tpu.memory_space<vmem>>, vector<16x128xf32>,
    return
  }
  func.func @transform_0(%arg0: i32) -> (i32, i32) {
    %c0_i32 = arith.constant 0 : i32
    %c0_i32_0 = arith.constant 0 : i32
    return %arg0, %c0_i32 : i32, i32
  }
  func.func @transform_1(%arg0: i32) -> (i32, i32) {
    %c0_i32 = arith.constant 0 : i32
    %c0_i32_0 = arith.constant 0 : i32
    %c0_i32_1 = arith.constant 0 : i32
    return %c0_i32, %c0_i32_0 : i32, i32
  }
  func.func @transform_2(%arg0: i32) -> (i32, i32) {
    %c0_i32 = arith.constant 0 : i32
    %c0_i32_0 = arith.constant 0 : i32
    %c0_i32_1 = arith.constant 0 : i32
    return %c0_i32, %c0_i32_0 : i32, i32
  }
  func.func @transform_3(%arg0: i32) -> (i32, i32) {
    %c0_i32 = arith.constant 0 : i32
    %c0_i32_0 = arith.constant 0 : i32
    %c0_i32_1 = arith.constant 0 : i32
    return %c0_i32, %c0_i32_0 : i32, i32
  }
  func.func @transform_4(%arg0: i32) -> (i32, i32) {
    %c0_i32 = arith.constant 0 : i32
    %c0_i32_0 = arith.constant 0 : i32
    return %arg0, %c0_i32 : i32, i32
  }
}

</mosaic_0001>

<llo_original>
// kernel: tpu_custom_call.1
$region0: #{tpu_custom_call.1}
  #allocation0 [shape = 'u32[]', space=smem, size = 0x4, offset = 0x4, fixed_abs, tag = 'smem constant byte address 0x4 - core index']
  #allocation1 [shape = 'u32[144,128]{1,0:T(1,128)}', space=vmem, size = 0x12000, scoped, tag = 'internal scratch']
  %s0 = inlined_call_operand.hbm [shape: f32[16,32], index: 0, kind: input, shape index: {}]
  %s1 = inlined_call_operand.hbm [shape: f32[32,128], index: 1, kind: input, shape index: {}]
  %s2 = inlined_call_operand.hbm [shape: f32[128,128], index: 2, kind: input, shape index: {}]
  %s3 = inlined_call_operand.vmem [shape: f32[1,128], index: 3, kind: input, shape index: {}]
  %s4 = inlined_call_operand.hbm [shape: f32[16,128], index: 4, kind: output, shape index: {}]
  %s5 = sld [smem:[#allocation0]]
  $region38: #{tpu_custom_call.1} parent=0
    _
  %s7 = ssub.s32 1, %s5
  %s8 = scalar_select 0, %s7, %s5
  $region1: #{tpu_custom_call.1} parent=0
    #allocation2 [shape = 'u8[8192]{0}', space=vmem, size = 0x2000, scoped, tag = 'input window, operand 0, single buffered']
    #allocation3 [shape = 's32[1]{0}', space=sflag, size = 0x4, scoped, tag = 'scoped memory for tpu_custom_call.1']
    #allocation4 [shape = 's32[1]{0}', space=sflag, size = 0x4, scoped, tag = 'scoped memory for tpu_custom_call.1']
    #allocation5 [shape = 'u8[16384]{0}', space=vmem, size = 0x4000, scoped, tag = 'input window, operand 1, single buffered']
    #allocation6 [shape = 's32[1]{0}', space=sflag, size = 0x4, scoped, tag = 'scoped memory for tpu_custom_call.1']
    #allocation7 [shape = 'u8[65536]{0}', space=vmem, size = 0x10000, scoped, tag = 'input window, operand 2, single buffered']
    #allocation8 [shape = 'u8[8192]{0}', space=vmem, size = 0x2000, scoped, tag = 'output window, operand 0, single buffered']
    %9 = vsyncpa [#allocation3], 0
    %10 = vsyncpa [#allocation6], 0
    %11 = vsyncpa [#allocation4], 0
    // Predicated region
    $region2: #{tpu_custom_call.1} parent=1 // pred_check
      _
    $region3: #{tpu_custom_call.1} parent=1 // pred_check_branch
      %13 = sbr.rel (0) target = $region5
    $region4: #{tpu_custom_call.1} parent=1 // pred_region
      %s15 = ssub.s32 256, 256
      %16 = vsyncadd [#allocation3], %s15
      %s17 = sshll.u32 [#allocation2], 4
      %s18 = int_to_ptr.vmem [resolvable:$true] %s17
      %23 = dma.hbm_to_vmem [thread:$0]  %s0, 256, %s18, [#allocation3], 128, 128, 8
    $region5: #{tpu_custom_call.1} parent=1 // pred_fallthru
      _
    // Predicated region
    $region6: #{tpu_custom_call.1} parent=1 // pred_check
      _
    $region7: #{tpu_custom_call.1} parent=1 // pred_check_branch
      %25 = sbr.rel (0) target = $region9
    $region8: #{tpu_custom_call.1} parent=1 // pred_region
      %s27 = ssub.s32 512, 512
      %28 = vsyncadd [#allocation6], %s27
      %s29 = sshll.u32 [#allocation5], 4
      %s30 = int_to_ptr.vmem [resolvable:$true] %s29
      %35 = dma.hbm_to_vmem [thread:$0]  %s1, 512, %s30, [#allocation6], 128, 128, 8
    $region9: #{tpu_custom_call.1} parent=1 // pred_fallthru
      _
    // Predicated region
    $region10: #{tpu_custom_call.1} parent=1 // pred_check
      _
    $region11: #{tpu_custom_call.1} parent=1 // pred_check_branch
      %37 = sbr.rel (0) target = $region13
    $region12: #{tpu_custom_call.1} parent=1 // pred_region
      %s39 = ssub.s32 2048, 2048
      %40 = vsyncadd [#allocation6], %s39
      %s41 = sshll.u32 [#allocation7], 4
      %s42 = int_to_ptr.vmem [resolvable:$true] %s41
      %47 = dma.hbm_to_vmem [thread:$0]  %s2, 2048, %s42, [#allocation6], 128, 128, 8
    $region13: #{tpu_custom_call.1} parent=1 // pred_fallthru
      _
    // Predicated region
    $region14: #{tpu_custom_call.1} parent=1 // pred_check
      _
    $region15: #{tpu_custom_call.1} parent=1 // pred_check_branch
      %49 = sbr.rel (0) target = $region17
    $region16: #{tpu_custom_call.1} parent=1 // pred_region
      _
    $region17: #{tpu_custom_call.1} parent=1 // pred_fallthru
      _
    // Predicated region
    $region18: #{tpu_custom_call.1} parent=1 // pred_check
      _
    $region19: #{tpu_custom_call.1} parent=1 // pred_check_branch
      %51 = sbr.rel (0) target = $region21
    $region20: #{tpu_custom_call.1} parent=1 // pred_region
      %52 = dma.done [#allocation3], 256
    $region21: #{tpu_custom_call.1} parent=1 // pred_fallthru
      _
    // Predicated region
    $region22: #{tpu_custom_call.1} parent=1 // pred_check
      _
    $region23: #{tpu_custom_call.1} parent=1 // pred_check_branch
      %54 = sbr.rel (0) target = $region25
    $region24: #{tpu_custom_call.1} parent=1 // pred_region
      %55 = dma.done [#allocation6], 512
    $region25: #{tpu_custom_call.1} parent=1 // pred_fallthru
      _
    // Predicated region
    $region26: #{tpu_custom_call.1} parent=1 // pred_check
      _
    $region27: #{tpu_custom_call.1} parent=1 // pred_check_branch
      %57 = sbr.rel (0) target = $region29
    $region28: #{tpu_custom_call.1} parent=1 // pred_region
      %58 = dma.done [#allocation6], 2048
    $region29: #{tpu_custom_call.1} parent=1 // pred_fallthru
      _
    %v59 = vld [vmem:[#allocation2] sm:$0xff]
    %v60 = vld [vmem:[#allocation2 + $0x8] sm:$0xff]
    %v61 = vld [vmem:[#allocation5] sm:$0xff]
    %v62 = vld [vmem:[#allocation5 + $0x8] sm:$0xff]
    %v63 = vld [vmem:[#allocation5 + $0x10] sm:$0xff]
    %v64 = vld [vmem:[#allocation5 + $0x18] sm:$0xff]
    %vm65 = vcmask 261120
    %v67 = vsel %vm65, %v59, 0
    %v70 = vsel %vm65, %v60, 0
    %72 = vmatprep.subr.mxu0 0.0
    %73 = vmatpush1.msra.mxu0 %v61
    %74 = vmatprep.subr.mxu0 0.0
    %75 = vmatpush1.msra.mxu0 %v62
    %76 = vmatprep.subr.mxu0 0.0
    %77 = vmatpush1.msra.mxu0 %v63
    %78 = vmatprep.subr.mxu0 0.0
    %79 = vmatpush1.msra.mxu0 %v64
    %80 = vmatprep.subr.mxu0 0.0
    %81 = vmatpush1.msra.mxu0 0.0
    %82 = vmatprep.subr.mxu0 0.0
    %83 = vmatpush1.msra.mxu0 0.0
    %84 = vmatprep.subr.mxu0 0.0
    %85 = vmatpush1.msra.mxu0 0.0
    %86 = vmatprep.subr.mxu0 0.0
    %87 = vmatpush1.msra.mxu0 0.0
    %88 = vmatprep.subr.mxu0 0.0
    %89 = vmatpush1.msra.mxu0 0.0
    %90 = vmatprep.subr.mxu0 0.0
    %91 = vmatpush1.msra.mxu0 0.0
    %92 = vmatprep.subr.mxu0 0.0
    %93 = vmatpush1.msra.mxu0 0.0
    %94 = vmatprep.subr.mxu0 0.0
    %95 = vmatpush1.msra.mxu0 0.0
    %96 = vmatprep.subr.mxu0 0.0
    %97 = vmatpush1.msra.mxu0 0.0
    %98 = vmatprep.subr.mxu0 0.0
    %99 = vmatpush1.msra.mxu0 0.0
    %100 = vmatprep.subr.mxu0 0.0
    %101 = vmatpush1.msra.mxu0 0.0
    %102 = vmatprep.subr.mxu0 0.0
    %103 = vmatpush1.msra.mxu0 0.0
    %104 = vmatprep.subr.mxu0 0.0
    %105 = vmatpush1.msra.mxu0 0.0
    %106 = vmatprep.subr.mxu0 0.0
    %107 = vmatpush1.msra.mxu0 0.0
    %108 = vmatprep.subr.mxu0 0.0
    %109 = vmatpush1.msra.mxu0 0.0
    %110 = vmatprep.subr.mxu0 0.0
    %111 = vmatpush1.msra.mxu0 0.0
    %112 = vmatprep.subr.mxu0 0.0
    %113 = vmatpush1.msra.mxu0 0.0
    %114 = vmatprep.subr.mxu0 0.0
    %115 = vmatpush1.msra.mxu0 0.0
    %116 = vmatprep.subr.mxu0 0.0
    %117 = vmatpush1.msra.mxu0 0.0
    %118 = vmatprep.subr.mxu0 0.0
    %119 = vmatpush1.msra.mxu0 0.0
    %120 = vmatprep.subr.mxu0 0.0
    %121 = vmatpush1.msra.mxu0 0.0
    %122 = vmatprep.subr.mxu0 0.0
    %123 = vmatpush1.msra.mxu0 0.0
    %124 = vmatprep.subr.mxu0 0.0
    %125 = vmatpush1.msra.mxu0 0.0
    %126 = vmatprep.subr.mxu0 0.0
    %127 = vmatpush1.msra.mxu0 0.0
    %128 = vmatprep.subr.mxu0 0.0
    %129 = vmatpush1.msra.mxu0 0.0
    %130 = vmatprep.subr.mxu0 0.0
    %131 = vmatpush1.msra.mxu0 0.0
    %132 = vmatprep.subr.mxu0 0.0
    %133 = vmatpush1.msra.mxu0 0.0
    %134 = vmatprep.subr.mxu0 0.0
    %135 = vmatpush1.msra.mxu0 0.0
    %136 = vmatprep.mubr.f32.mxu0 0.0
    %137 = vmatmul.mubr.f32.gmra.mrb[0].mxu0 %v67
    %v138 = vpop.f32.mrb[0].mxu0
    %v139 = vadd.f32 0.0, %v138
    %v140 = vpop.f32.mrb[0].mxu0
    %141 = vmatprep.mubr.f32.mxu0 0.0
    %142 = vmatmul.mubr.f32.gmra.mrb[0].mxu0 %v70
    %v143 = vpop.f32.mrb[0].mxu0
    %v144 = vadd.f32 0.0, %v143
    %v145 = vpop.f32.mrb[0].mxu0
    %146 = vdwg.mxu0
    %v147 = vld [vmem:[#allocation7] sm:$0xff]
    %v148 = vld [vmem:[#allocation7 + $0x8] sm:$0xff]
    %v149 = vld [vmem:[#allocation7 + $0x10] sm:$0xff]
    %v150 = vld [vmem:[#allocation7 + $0x18] sm:$0xff]
    %v151 = vld [vmem:[#allocation7 + $0x20] sm:$0xff]
    %v152 = vld [vmem:[#allocation7 + $0x28] sm:$0xff]
    %v153 = vld [vmem:[#allocation7 + $0x30] sm:$0xff]
    %v154 = vld [vmem:[#allocation7 + $0x38] sm:$0xff]
    %v155 = vld [vmem:[#allocation7 + $0x40] sm:$0xff]
    %v156 = vld [vmem:[#allocation7 + $0x48] sm:$0xff]
    %v157 = vld [vmem:[#allocation7 + $0x50] sm:$0xff]
    %v158 = vld [vmem:[#allocation7 + $0x58] sm:$0xff]
    %v159 = vld [vmem:[#allocation7 + $0x60] sm:$0xff]
    %v160 = vld [vmem:[#allocation7 + $0x68] sm:$0xff]
    %v161 = vld [vmem:[#allocation7 + $0x70] sm:$0xff]
    %v162 = vld [vmem:[#allocation7 + $0x78] sm:$0xff]
    %v163 = vld [vmem:[%s3] sm:$0x1]
    %v165 = vlaneseq
    %v166 = vshrl.u32 %v165, 7
    %v167 = vsub.s32 0, %v166
    %v168 = vrot.slane %v163, %v167
    %170 = vmatprep.subr.mxu0 0.0
    %171 = vmatpush1.msra.mxu0 %v147
    %172 = vmatprep.subr.mxu0 0.0
    %173 = vmatpush1.msra.mxu0 %v148
    %174 = vmatprep.subr.mxu0 0.0
    %175 = vmatpush1.msra.mxu0 %v149
    %176 = vmatprep.subr.mxu0 0.0
    %177 = vmatpush1.msra.mxu0 %v150
    %178 = vmatprep.subr.mxu0 0.0
    %179 = vmatpush1.msra.mxu0 %v151
    %180 = vmatprep.subr.mxu0 0.0
    %181 = vmatpush1.msra.mxu0 %v152
    %182 = vmatprep.subr.mxu0 0.0
    %183 = vmatpush1.msra.mxu0 %v153
    %184 = vmatprep.subr.mxu0 0.0
    %185 = vmatpush1.msra.mxu0 %v154
    %186 = vmatprep.subr.mxu0 0.0
    %187 = vmatpush1.msra.mxu0 %v155
    %188 = vmatprep.subr.mxu0 0.0
    %189 = vmatpush1.msra.mxu0 %v156
    %190 = vmatprep.subr.mxu0 0.0
    %191 = vmatpush1.msra.mxu0 %v157
    %192 = vmatprep.subr.mxu0 0.0
    %193 = vmatpush1.msra.mxu0 %v158
    %194 = vmatprep.subr.mxu0 0.0
    %195 = vmatpush1.msra.mxu0 %v159
    %196 = vmatprep.subr.mxu0 0.0
    %197 = vmatpush1.msra.mxu0 %v160
    %198 = vmatprep.subr.mxu0 0.0
    %199 = vmatpush1.msra.mxu0 %v161
    %200 = vmatprep.subr.mxu0 0.0
    %201 = vmatpush1.msra.mxu0 %v162
    %202 = vmatprep.subr.mxu0 0.0
    %203 = vmatpush1.msra.mxu0 0.0
    %204 = vmatprep.subr.mxu0 0.0
    %205 = vmatpush1.msra.mxu0 0.0
    %206 = vmatprep.subr.mxu0 0.0
    %207 = vmatpush1.msra.mxu0 0.0
    %208 = vmatprep.subr.mxu0 0.0
    %209 = vmatpush1.msra.mxu0 0.0
    %210 = vmatprep.subr.mxu0 0.0
    %211 = vmatpush1.msra.mxu0 0.0
    %212 = vmatprep.subr.mxu0 0.0
    %213 = vmatpush1.msra.mxu0 0.0
    %214 = vmatprep.subr.mxu0 0.0
    %215 = vmatpush1.msra.mxu0 0.0
    %216 = vmatprep.subr.mxu0 0.0
    %217 = vmatpush1.msra.mxu0 0.0
    %218 = vmatprep.subr.mxu0 0.0
    %219 = vmatpush1.msra.mxu0 0.0
    %220 = vmatprep.subr.mxu0 0.0
    %221 = vmatpush1.msra.mxu0 0.0
    %222 = vmatprep.subr.mxu0 0.0
    %223 = vmatpush1.msra.mxu0 0.0
    %224 = vmatprep.subr.mxu0 0.0
    %225 = vmatpush1.msra.mxu0 0.0
    %226 = vmatprep.subr.mxu0 0.0
    %227 = vmatpush1.msra.mxu0 0.0
    %228 = vmatprep.subr.mxu0 0.0
    %229 = vmatpush1.msra.mxu0 0.0
    %230 = vmatprep.subr.mxu0 0.0
    %231 = vmatpush1.msra.mxu0 0.0
    %232 = vmatprep.subr.mxu0 0.0
    %233 = vmatpush1.msra.mxu0 0.0
    %234 = vmatprep.mubr.f32.mxu0 0.0
    %235 = vmatmul.mubr.f32.gmra.mrb[0].mxu0 %v139
    %v236 = vpop.f32.mrb[0].mxu0
    %v237 = vadd.f32 %v168, %v236
    %v238 = vpop.f32.mrb[0].mxu0
    %239 = vmatprep.mubr.f32.mxu0 0.0
    %240 = vmatmul.mubr.f32.gmra.mrb[0].mxu0 %v144
    %v241 = vpop.f32.mrb[0].mxu0
    %v242 = vadd.f32 %v168, %v241
    %v243 = vpop.f32.mrb[0].mxu0
    %244 = vdwg.mxu0
    %245 = vst [vmem:[#allocation8] sm:$0xff] %v237
    %246 = vst [vmem:[#allocation8 + $0x8] sm:$0xff] %v242
    // Predicated region
    $region30: #{tpu_custom_call.1} parent=1 // pred_check
      _
    $region31: #{tpu_custom_call.1} parent=1 // pred_check_branch
      %248 = sbr.rel (0) target = $region33
    $region32: #{tpu_custom_call.1} parent=1 // pred_region
      %s250 = ssub.s32 256, 256
      %251 = vsyncadd [#allocation4], %s250
      %s252 = sshll.u32 [#allocation8], 4
      %s253 = int_to_ptr.vmem [resolvable:$true] %s252
      %258 = dma.vmem_to_hbm [thread:$0]  %s253, 256, %s4, [#allocation4], 128, 128, 8
    $region33: #{tpu_custom_call.1} parent=1 // pred_fallthru
      _
    // Predicated region
    $region34: #{tpu_custom_call.1} parent=1 // pred_check
      _
    $region35: #{tpu_custom_call.1} parent=1 // pred_check_branch
      %260 = sbr.rel (0) target = $region37
    $region36: #{tpu_custom_call.1} parent=1 // pred_region
      %261 = dma.done [#allocation4], 256
    $region37: #{tpu_custom_call.1} parent=1 // pred_fallthru
      _
    %262 = vsyncpa [#allocation3], 1
    %263 = vsyncpa [#allocation6], 1
    %264 = vsyncpa [#allocation4], 1

</llo_original>
